<compile_context>
chip_gen: v7x
topology: tpu7x:2x2x1
jax: 0.10.0
libtpu: 0.0.40
codegen_flags: <defaults>
</compile_context>

<pallas_src>
import functools

import jax
import jax.numpy as jnp
from jax import lax
from jax.experimental import pallas as pl
from jax.experimental.pallas import tpu as pltpu

GAIN = 1.0
BKG = 1e-3

_LANES = 128
_SUBLANES = 8


def _poisson_val(x_raw, y_raw):
    """Elementwise Poisson NLL integrand, computed in f32."""
    x = x_raw.astype(jnp.float32)
    y = y_raw.astype(jnp.float32)
    gx = x if GAIN == 1.0 else GAIN * x
    return gx - y * jnp.log(gx + BKG)


@functools.lru_cache(maxsize=1)
def _tpu_defaults():
    """(num TensorCores usable by one Pallas kernel, VMEM input-buffer budget)."""
    kind = ""
    try:
        dev = jax.devices()[0]
        if dev.platform == "tpu":
            kind = dev.device_kind.lower()
    except Exception:
        pass
    # v4 / v5p megacore and v7x expose 2 TensorCores to one Pallas kernel;
    # v2/v3/v5e/v6e effectively expose 1.
    num_tc = 2 if any(tag in kind for tag in ("v4", "v5p", "v7")) else 1
    # Conservative on v7x (64 MiB physical VMEM / 32 MiB scoped default).
    budget = (12 if "v7" in kind else 16) * 1024 * 1024
    return num_tc, budget


# ----------------------------------------------------------------------------
# Kernel factories
# ----------------------------------------------------------------------------
def _make_dense_kernel(B, R, tr, nbpp, nb, need_mask, direct):
    """Lane/sublane-dense path: inputs viewed as (B, R, 128), tiles (B, tr, 128)."""
    edge_start = R // tr  # first (unclamped) block index containing rows >= R

    def accum(acc_ref, v):
        # Fold the tr sublane-rows down to one (8, 128) sublane group with pure
        # VPU adds.  The reshape splits the sublane-tiled axis exactly at the
        # (8, 128) tile boundary, so it is layout-preserving (no relayout).
        vg = v.reshape(B, tr // _SUBLANES, _SUBLANES, _LANES)
        acc_ref[...] += jnp.sum(vg, axis=1)

    def kernel(x_ref, y_ref, o_ref, acc_ref):
        p = pl.program_id(0)
        j = pl.program_id(1)

        val = _poisson_val(x_ref[...], y_ref[...])          # (B, tr, 128) f32

        if direct:
            # Single block covers all R rows: no accumulator / mask needed.
            o_ref[...] = jnp.sum(val, axis=1)[None, :, :]
            return

        @pl.when(j == 0)
        def _():
            acc_ref[...] = jnp.zeros_like(acc_ref)

        if need_mask:
            blk = p * nbpp + j                              # unclamped block idx
            is_edge = blk >= edge_start

            @pl.when(jnp.logical_not(is_edge))
            def _():
                accum(acc_ref, val)

            @pl.when(is_edge)
            def _():
                # Zero rows past the true row count R (ragged last tile and any
                # duplicated clamped tile from an uneven parallel split).
                rows = blk * tr + lax.broadcasted_iota(jnp.int32, (tr, _LANES), 0)
                accum(acc_ref, jnp.where((rows < R)[None, :, :], val, 0.0))
        else:
            accum(acc_ref, val)

        @pl.when(j == pl.num_programs(1) - 1)
        def _():
            # One cross-sublane reduce + one lane-dense (B, 128) store per chunk.
            o_ref[...] = jnp.sum(acc_ref[...], axis=1)[None, :, :]

    return kernel


def _make_ragged_kernel(B, N, tn, need_lane_mask):
    """Ragged fallback: unpadded (B, N) layout, tiles (B, tn), lane mask on tail."""

    def kernel(x_ref, y_ref, o_ref, acc_ref):
        j = pl.program_id(0)
        nj = pl.num_programs(0)

        @pl.when(j == 0)
        def _():
            acc_ref[...] = jnp.zeros_like(acc_ref)

        val = _poisson_val(x_ref[...], y_ref[...])          # (B, tn) f32

        if need_lane_mask:
            is_last = j == nj - 1

            @pl.when(jnp.logical_not(is_last))
            def _():
                acc_ref[...] += jnp.sum(val, axis=-1, keepdims=True)

            @pl.when(is_last)
            def _():
                col = j * tn + lax.broadcasted_iota(jnp.int32, (B, tn), 1)
                masked = jnp.where(col < N, val, 0.0)
                acc_ref[...] += jnp.sum(masked, axis=-1, keepdims=True)
        else:
            acc_ref[...] += jnp.sum(val, axis=-1, keepdims=True)

        @pl.when(j == nj - 1)
        def _():
            o_ref[...] = acc_ref[...]

    return kernel


# ----------------------------------------------------------------------------
# Wrapper
# ----------------------------------------------------------------------------
def poisson_potential(x, y, *, tile_rows=None, num_parallel=None,
                      vmem_budget_bytes=None, cast_inputs_to=None):
    """h(x; y) = sum(GAIN*x - y*log(GAIN*x + BKG)) per batch element, via Pallas.

    Returns shape (B,) float32.
    """
    assert x.shape == y.shape
    B = x.shape[0]
    xf = x.reshape(B, -1)
    yf = y.reshape(B, -1)
    if cast_inputs_to is not None:
        # Opt-in: halves HBM traffic for this bandwidth-bound kernel, but only
        # pays off when the caller already stores x/y in the narrow dtype
        # (otherwise the cast itself is an extra HBM pass), and adds ~2^-8
        # relative error inside the log.  Off by default.
        xf = xf.astype(cast_inputs_to)
        yf = yf.astype(cast_inputs_to)
    N = xf.shape[1]

    num_tc, default_budget = _tpu_defaults()
    budget = default_budget if vmem_budget_bytes is None else vmem_budget_bytes
    blk_budget = max(budget // 4, 64 * 1024)      # 2 inputs x 2 pipeline buffers
    itemsize = jnp.dtype(xf.dtype).itemsize

    compiler_common = dict(vmem_limit_bytes=32 * 1024 * 1024)

    if N % _LANES == 0:
        # --------------------------------------------------------------------
        # Aligned path: free reshape to the lane/sublane-dense (B, R, 128) view.
        # --------------------------------------------------------------------
        R = N // _LANES
        x3 = xf.reshape(B, R, _LANES)
        y3 = yf.reshape(B, R, _LANES)

        if R <= _SUBLANES:
            tr = R                                  # tiny input: single block
        elif tile_rows is not None:
            tr = min(tile_rows, R)
            if tr < R:
                tr = max(_SUBLANES, (tr // _SUBLANES) * _SUBLANES)
        else:
            tr = max(_SUBLANES, min(blk_budget // (B * _LANES * itemsize), R))
            tr = (tr // _SUBLANES) * _SUBLANES

        nb = -(-R // tr)                            # total row blocks
        direct = nb == 1
        if direct:
            num_par = 1
        else:
            num_par = num_tc if num_parallel is None else num_parallel
            num_par = max(1, min(num_par, nb))
        nbpp = -(-nb // num_par)                    # row blocks per parallel chunk
        need_mask = (num_par * nbpp * tr) != R

        # TODO(synk): when nb is odd the second chunk re-reads one clamped
        # block (masked to zero); avoiding it would need a non-rectangular
        # grid, so we accept one wasted tile per call.
        if num_par * nbpp == nb:
            row_map = lambda p, j: (0, p * nbpp + j, 0)
        else:
            row_map = lambda p, j: (0, jnp.minimum(p * nbpp + j, nb - 1), 0)

        kernel = _make_dense_kernel(B, R, tr, nbpp, nb, need_mask, direct)

        partial = pl.pallas_call(
            kernel,
            out_shape=jax.ShapeDtypeStruct((num_par, B, _LANES), jnp.float32),
            grid_spec=pltpu.PrefetchScalarGridSpec(
                num_scalar_prefetch=0,
                grid=(num_par, nbpp),
                in_specs=[
                    pl.BlockSpec((B, tr, _LANES), row_map),
                    pl.BlockSpec((B, tr, _LANES), row_map),
                ],
                out_specs=pl.BlockSpec((1, B, _LANES), lambda p, j: (p, 0, 0)),
                scratch_shapes=[pltpu.VMEM((B, _SUBLANES, _LANES), jnp.float32)],
            ),
            compiler_params=pltpu.CompilerParams(
                # TODO(synk): on v7x, verify via profile that "parallel" shards
                # across both TensorCores; otherwise switch to CORE_PARALLEL.
                dimension_semantics=("parallel", "arbitrary"),
                **compiler_common,
            ),
        )(x3, y3)

        # Tiny final reduction over (num_par, 128) lane partials per batch row.
        return jnp.sum(partial, axis=(0, 2))

    # ------------------------------------------------------------------------
    # Ragged path: keep the (B, N) array unpadded (no full-array HBM copy) and
    # mask the partial last lane-block in-kernel.
    # TODO(synk): for B < 8 this layout wastes sublanes in VMEM/vregs; it is
    # still HBM-bound and avoids the ~2x traffic of padding.
    # ------------------------------------------------------------------------
    pad_rows = -(-B // _SUBLANES) * _SUBLANES       # VMEM sublane padding of B
    if N < _LANES:
        tn = N                                      # block == full array dims
    else:
        tn = max(_LANES, blk_budget // (pad_rows * itemsize))
        tn = (tn // _LANES) * _LANES
        tn = min(tn, (N // _LANES) * _LANES)
    nj = -(-N // tn)
    need_lane_mask = (N % tn) != 0

    kernel = _make_ragged_kernel(B, N, tn, need_lane_mask)

    partial = pl.pallas_call(
        kernel,
        out_shape=jax.ShapeDtypeStruct((B, 1), jnp.float32),
        grid_spec=pltpu.PrefetchScalarGridSpec(
            num_scalar_prefetch=0,
            grid=(nj,),
            in_specs=[
                pl.BlockSpec((B, tn), lambda j: (0, j)),
                pl.BlockSpec((B, tn), lambda j: (0, j)),
            ],
            out_specs=pl.BlockSpec((B, 1), lambda j: (0, 0)),
            scratch_shapes=[pltpu.VMEM((B, 1), jnp.float32)],
        ),
        compiler_params=pltpu.CompilerParams(
            dimension_semantics=("arbitrary",),
            **compiler_common,
        ),
    )(xf, yf)

    return partial[:, 0]


class Potential:
    """JAX port of the base `Potential` module: forward(x) = _fn(x, *args)."""

    def __init__(self, fn=None):
        self._fn = fn

    def fn(self, x, *args, **kwargs):
        return self._fn(x, *args, **kwargs)

    def forward(self, x, *args, **kwargs):
        return self.fn(x, *args, **kwargs)

    __call__ = forward

    # TODO(synk): conjugate / grad / prox rely on autodiff + inner gradient
    # descent loops over an arbitrary callable; only the forward hot path is
    # implemented as a Pallas kernel here.


def _reference(x, y):
    B = x.shape[0]
    return jnp.sum((GAIN * x - y * jnp.log(GAIN * x + BKG)).reshape(B, -1), axis=-1)


if __name__ == "__main__":
    key = jax.random.PRNGKey(0)
    kx, ky, kx2, ky2, kx3, ky3 = jax.random.split(key, 6)

    potential = Potential(fn=poisson_potential)

    # Case 1: small NCHW input (aligned, C*H*W = 1024 -> R=8, single-block path).
    B, C, H, W = 2, 4, 16, 16
    x = jax.random.uniform(kx, (B, C, H, W), dtype=jnp.float32, minval=0.1, maxval=1.0)
    y = jnp.floor(10.0 * jax.random.uniform(ky, (B, C, H, W), dtype=jnp.float32))
    h = jax.block_until_ready(potential(x, y))
    ref = _reference(x, y)
    assert h.shape == (B,)
    assert jnp.allclose(h, ref, rtol=1e-4, atol=1e-2), (h, ref)

    # Case 2: ragged feature count (N = 9500, not a multiple of 128) — exercises
    # the unpadded (B, N) fallback path with the in-kernel lane mask.
    B2, C2, H2, W2 = 2, 1, 100, 95
    x2 = jax.random.uniform(kx2, (B2, C2, H2, W2), dtype=jnp.float32,
                            minval=0.1, maxval=1.0)
    y2 = jnp.floor(10.0 * jax.random.uniform(ky2, (B2, C2, H2, W2), dtype=jnp.float32))
    h2 = jax.block_until_ready(potential(x2, y2))
    ref2 = _reference(x2, y2)
    assert h2.shape == (B2,)
    assert jnp.allclose(h2, ref2, rtol=1e-4, atol=1e-2), (h2, ref2)

    # Case 3: aligned multi-block path (R=120, tr=16 -> nb=8) with a forced
    # 2-way parallel split and a ragged last row-block (gated mask path).
    B3, C3, H3, W3 = 2, 3, 40, 128
    x3 = jax.random.uniform(kx3, (B3, C3, H3, W3), dtype=jnp.float32,
                            minval=0.1, maxval=1.0)
    y3 = jnp.floor(10.0 * jax.random.uniform(ky3, (B3, C3, H3, W3), dtype=jnp.float32))
    h3 = jax.block_until_ready(potential(x3, y3, tile_rows=16, num_parallel=2))
    ref3 = _reference(x3, y3)
    assert h3.shape == (B3,)
    assert jnp.allclose(h3, ref3, rtol=1e-4, atol=1e-2), (h3, ref3)

    # Case 4: odd block count (tr=48 -> nb=3) with a forced 2-way split —
    # exercises the clamped duplicate block + ragged-row masking together.
    h4 = jax.block_until_ready(potential(x3, y3, tile_rows=48, num_parallel=2))
    assert jnp.allclose(h4, ref3, rtol=1e-4, atol=1e-2), (h4, ref3)

    print("KERNEL_OK")
</pallas_src>

<mosaic_0001>
module attributes {stable_mosaic.version = 11 : i64} {
  func.func @kernel(%arg0: i32, %arg1: i32, %arg2: memref<2x8x128xf32, #tpu.memory_space<vmem>>, %arg3: memref<2x8x128xf32, #tpu.memory_space<vmem>>, %arg4: memref<1x2x128xf32, #tpu.memory_space<vmem>>, %arg5: memref<2x8x128xf32, #tpu.memory_space<vmem>>) attributes {dimension_semantics = [#tpu.dimension_semantics<parallel>, #tpu.dimension_semantics<arbitrary>], iteration_bounds = array<i64: 1, 1>, scalar_prefetch = 0 : i64, scratch_operands = 1 : i64, tpu.core_type = #tpu.core_type<tc>, window_params = [{transform_indices = @transform_0, window_bounds = array<i64: 2, 8, 128>}, {transform_indices = @transform_1, window_bounds = array<i64: 2, 8, 128>}, {transform_indices = @transform_2, window_bounds = array<i64: 1, 2, 128>}]} {
    %c0 = arith.constant 0 : index
    %c0_0 = arith.constant 0 : index
    %c0_1 = arith.constant 0 : index
    %0 = vector.load %arg2[%c0, %c0_0, %c0_1] : memref<2x8x128xf32, #tpu.memory_space<vmem>>, vector<2x8x128xf32>
    %c0_2 = arith.constant 0 : index
    %c0_3 = arith.constant 0 : index
    %c0_4 = arith.constant 0 : index
    %1 = vector.load %arg3[%c0_2, %c0_3, %c0_4] : memref<2x8x128xf32, #tpu.memory_space<vmem>>, vector<2x8x128xf32>
    %cst = arith.constant 1.000000e-03 : f32
    %2 = vector.broadcast %cst : f32 to vector<2x8x128xf32>
    %3 = arith.addf %0, %2 : vector<2x8x128xf32>
    %4 = math.log %3 : vector<2x8x128xf32>
    %5 = arith.mulf %1, %4 : vector<2x8x128xf32>
    %6 = arith.subf %0, %5 : vector<2x8x128xf32>
    %cst_5 = arith.constant dense<0.000000e+00> : vector<2x128xf32>
    %7 = vector.multi_reduction <add>, %6, %cst_5 [1] : vector<2x8x128xf32> to vector<2x128xf32>
    %8 = vector.shape_cast %7 : vector<2x128xf32> to vector<1x2x128xf32>
    %c0_6 = arith.constant 0 : index
    %c0_7 = arith.constant 0 : index
    %c0_8 = arith.constant 0 : index
    %9 = vector.load %arg4[%c0_6, %c0_7, %c0_8] : memref<1x2x128xf32, #tpu.memory_space<vmem>>, vector<1x2x128xf32>
    tpu.vector_store %arg4[%c0_6, %c0_7, %c0_8], %8 {strides = array<i32>} : memref<1x2x128xf32, #tpu.memory_space<vmem>>, vector<1x2x128xf32>,
    return
  }
  func.func @transform_0(%arg0: i32, %arg1: i32) -> (i32, i32, i32) {
    %c1_i32 = arith.constant 1 : i32
    %0 = arith.muli %arg0, %c1_i32 : i32
    %1 = arith.addi %0, %arg1 : i32
    %c0_i32 = arith.constant 0 : i32
    %c0_i32_0 = arith.constant 0 : i32
    %c0_i32_1 = arith.constant 0 : i32
    return %c0_i32, %1, %c0_i32_0 : i32, i32, i32
  }
  func.func @transform_1(%arg0: i32, %arg1: i32) -> (i32, i32, i32) {
    %c1_i32 = arith.constant 1 : i32
    %0 = arith.muli %arg0, %c1_i32 : i32
    %1 = arith.addi %0, %arg1 : i32
    %c0_i32 = arith.constant 0 : i32
    %c0_i32_0 = arith.constant 0 : i32
    %c0_i32_1 = arith.constant 0 : i32
    return %c0_i32, %1, %c0_i32_0 : i32, i32, i32
  }
  func.func @transform_2(%arg0: i32, %arg1: i32) -> (i32, i32, i32) {
    %c0_i32 = arith.constant 0 : i32
    %c0_i32_0 = arith.constant 0 : i32
    %c0_i32_1 = arith.constant 0 : i32
    return %arg0, %c0_i32, %c0_i32_0 : i32, i32, i32
  }
}

</mosaic_0001>

<llo_original>
// kernel: tpu_custom_call.1
$region0: #{tpu_custom_call.1}
  #allocation0 [shape = 'u32[]', space=smem, size = 0x4, offset = 0x4, fixed_abs, tag = 'smem constant byte address 0x4 - core index']
  #allocation1 [shape = 'u32[144,128]{1,0:T(1,128)}', space=vmem, size = 0x12000, scoped, tag = 'internal scratch']
  #allocation2 [shape = 'f32[2,8,128]{2,1,0:T(8,128)}', space=vmem, size = 0x2000, scoped, tag = 'scratch operand']
  %s0 = inlined_call_operand.hbm [shape: f32[2,8,128], index: 0, kind: input, shape index: {}]
  %s1 = inlined_call_operand.hbm [shape: f32[2,8,128], index: 1, kind: input, shape index: {}]
  %s2 = inlined_call_operand.hbm [shape: f32[1,2,128], index: 2, kind: output, shape index: {}]
  %s3 = sld [smem:[#allocation0]]
  $region26: #{tpu_custom_call.1} parent=0
    _
  %s5 = ssub.s32 1, %s3
  %s6 = scalar_select 0, %s5, %s3
  $region1: #{tpu_custom_call.1} parent=0
    #allocation3 [shape = 'u8[8192]{0}', space=vmem, size = 0x2000, scoped, tag = 'input window, operand 0, single buffered']
    #allocation4 [shape = 's32[1]{0}', space=sflag, size = 0x4, scoped, tag = 'scoped memory for tpu_custom_call.1']
    #allocation5 [shape = 's32[1]{0}', space=sflag, size = 0x4, scoped, tag = 'scoped memory for tpu_custom_call.1']
    #allocation6 [shape = 'u8[8192]{0}', space=vmem, size = 0x2000, scoped, tag = 'input window, operand 1, single buffered']
    #allocation7 [shape = 's32[1]{0}', space=sflag, size = 0x4, scoped, tag = 'scoped memory for tpu_custom_call.1']
    #allocation8 [shape = 'u8[1024]{0}', space=vmem, size = 0x400, scoped, tag = 'output window, operand 0, single buffered']
    %7 = vsyncpa [#allocation4], 0
    %8 = vsyncpa [#allocation7], 0
    %9 = vsyncpa [#allocation5], 0
    // Predicated region
    $region2: #{tpu_custom_call.1} parent=1 // pred_check
      _
    $region3: #{tpu_custom_call.1} parent=1 // pred_check_branch
      %11 = sbr.rel (0) target = $region5
    $region4: #{tpu_custom_call.1} parent=1 // pred_region
      %s12 = sadd.s32 0, 0
      %s14 = ssub.s32 256, 256
      %15 = vsyncadd [#allocation4], %s14
      %s16 = smul.addr %s12, 128
      %s17 = scalar_lea.hbm %s0, %s16
      %s18 = sshll.u32 [#allocation3], 4
      %s19 = int_to_ptr.vmem [resolvable:$true] %s18
      %24 = dma.hbm_to_vmem [thread:$0]  %s17, 256, %s19, [#allocation4], 128, 128, 8
    $region5: #{tpu_custom_call.1} parent=1 // pred_fallthru
      _
    // Predicated region
    $region6: #{tpu_custom_call.1} parent=1 // pred_check
      _
    $region7: #{tpu_custom_call.1} parent=1 // pred_check_branch
      %26 = sbr.rel (0) target = $region9
    $region8: #{tpu_custom_call.1} parent=1 // pred_region
      %s27 = sadd.s32 0, 0
      %s29 = ssub.s32 256, 256
      %30 = vsyncadd [#allocation7], %s29
      %s31 = smul.addr %s27, 128
      %s32 = scalar_lea.hbm %s1, %s31
      %s33 = sshll.u32 [#allocation6], 4
      %s34 = int_to_ptr.vmem [resolvable:$true] %s33
      %39 = dma.hbm_to_vmem [thread:$0]  %s32, 256, %s34, [#allocation7], 128, 128, 8
    $region9: #{tpu_custom_call.1} parent=1 // pred_fallthru
      _
    // Predicated region
    $region10: #{tpu_custom_call.1} parent=1 // pred_check
      _
    $region11: #{tpu_custom_call.1} parent=1 // pred_check_branch
      %41 = sbr.rel (0) target = $region13
    $region12: #{tpu_custom_call.1} parent=1 // pred_region
      %42 = dma.done [#allocation4], 256
    $region13: #{tpu_custom_call.1} parent=1 // pred_fallthru
      _
    // Predicated region
    $region14: #{tpu_custom_call.1} parent=1 // pred_check
      _
    $region15: #{tpu_custom_call.1} parent=1 // pred_check_branch
      %44 = sbr.rel (0) target = $region17
    $region16: #{tpu_custom_call.1} parent=1 // pred_region
      %45 = dma.done [#allocation7], 256
    $region17: #{tpu_custom_call.1} parent=1 // pred_fallthru
      _
    %s46 = sadd.s32 0, 0
    %s47 = sadd.s32 0, 0
    %v48 = vld [vmem:[#allocation3] sm:$0xff]
    %v49 = vld [vmem:[#allocation3 + $0x8] sm:$0xff]
    %v50 = vld [vmem:[#allocation6] sm:$0xff]
    %v51 = vld [vmem:[#allocation6 + $0x8] sm:$0xff]
    %v52 = vadd.f32 %v48, 0.001
    %v53 = vadd.f32 %v49, 0.001
    %v54 = vlog2.pop %v52
    %v55 = vmul.f32 %v54, 0.6931472
    %v56 = vlog2.pop %v53
    %v57 = vmul.f32 %v56, 0.6931472
    %v58 = vmul.f32 %v50, %v55
    %v59 = vmul.f32 %v51, %v57
    %v60 = vsub.f32 %v48, %v58
    %v61 = vsub.f32 %v49, %v59
    %v62 = vrot.slane %v60, 4
    %v63 = vadd.f32 %v60, %v62
    %v64 = vrot.slane %v63, 2
    %v65 = vadd.f32 %v63, %v64
    %v66 = vrot.slane %v65, 1
    %v67 = vadd.f32 %v65, %v66
    %v68 = vrot.slane %v61, 4
    %v69 = vadd.f32 %v61, %v68
    %v70 = vrot.slane %v69, 2
    %v71 = vadd.f32 %v69, %v70
    %v72 = vrot.slane %v71, 1
    %v73 = vadd.f32 %v71, %v72
    %vm76 = vcmask 1041409
    %v77 = vsel %vm76, %v73, %v67
    %79 = vst [vmem:[#allocation8] sm:$0x3] %v77
    // Predicated region
    $region18: #{tpu_custom_call.1} parent=1 // pred_check
      _
    $region19: #{tpu_custom_call.1} parent=1 // pred_check_branch
      %81 = sbr.rel (0) target = $region21
    $region20: #{tpu_custom_call.1} parent=1 // pred_region
      %s83 = ssub.s32 32, 32
      %84 = vsyncadd [#allocation5], %s83
      %s86 = sshll.u32 [#allocation8], 4
      %s87 = int_to_ptr.vmem [resolvable:$true] %s86
      %89 = dma.vmem_to_hbm [thread:$0]  %s87, 32, %s2, [#allocation5]
    $region21: #{tpu_custom_call.1} parent=1 // pred_fallthru
      _
    // Predicated region
    $region22: #{tpu_custom_call.1} parent=1 // pred_check
      _
    $region23: #{tpu_custom_call.1} parent=1 // pred_check_branch
      %91 = sbr.rel (0) target = $region25
    $region24: #{tpu_custom_call.1} parent=1 // pred_region
      %92 = dma.done [#allocation5], 32
    $region25: #{tpu_custom_call.1} parent=1 // pred_fallthru
      _
    %93 = vsyncpa [#allocation4], 1
    %94 = vsyncpa [#allocation7], 1
    %95 = vsyncpa [#allocation5], 1

</llo_original>
